<compile_context>
chip_gen: v7x
topology: tpu7x:2x2x1
jax: 0.10.0
libtpu: 0.0.40
codegen_flags: <defaults>
</compile_context>

<pallas_src>
import functools
import numpy as np

import jax
import jax.numpy as jnp
from jax import lax
from jax.experimental import pallas as pl
from jax.experimental.pallas import tpu as pltpu

BN_EPS = 1e-5
LANE = 128


# ---------------------------------------------------------------------------
# Per-generation configuration (safe fallbacks if introspection fails)
# ---------------------------------------------------------------------------
@functools.lru_cache(maxsize=None)
def _tpu_config():
    """Returns (vmem_limit_bytes, num_tensorcores_sharing_the_grid)."""
    vmem_limit = 32 * 1024 * 1024          # conservative default, always valid
    num_cores = 1
    try:
        kind = jax.devices()[0].device_kind.lower()
    except Exception:
        kind = ""
    physical = None
    try:
        info = pltpu.get_tpu_info()
        for name in ("vmem_capacity_bytes", "vmem_bytes", "vmem_size_bytes"):
            v = getattr(info, name, None)
            if isinstance(v, int) and v > 0:
                physical = v
                break
        for name in ("num_cores", "tensor_cores_per_chip", "cores_per_chip"):
            v = getattr(info, name, None)
            if isinstance(v, int) and v > 0:
                num_cores = v
                break
    except Exception:
        pass
    if physical is None:
        # Heuristic: v5e / v6e have 128 MiB VMEM per TensorCore.
        if any(t in kind for t in ("v5 lite", "v5e", "v6 lite", "v6e", "v6")):
            physical = 128 * 1024 * 1024
    # Raise the scoped-VMEM cap only on 128 MiB chips (never on v7x: 64 MiB).
    if (physical is not None and physical >= 100 * 1024 * 1024
            and "v7" not in kind):
        vmem_limit = 96 * 1024 * 1024
    # v7x (2 TCs) and megacore chips (v4 / v5p) shard "parallel" grid axes.
    if num_cores < 2 and any(t in kind for t in ("v7", "v4", "v5p")):
        num_cores = 2
    return vmem_limit, num_cores


def _round_up(x, m):
    return ((x + m - 1) // m) * m


def _select_tiles(M, K, N, vmem_limit, num_cores):
    """Pick (TM, Mp, TK, Kp, TN, Nfull, single_k) for the fused GEMM."""
    budget = int(0.70 * vmem_limit)

    # --- N: lane-dense multiple of 128; tile at 256 when large so the f32
    #        accumulator / double-buffered output stay bounded (v7x) while
    #        keeping full 256-wide MXU columns (v6e/v7x).
    n128 = _round_up(max(N, LANE), LANE)
    if n128 <= 512:
        TN, Nfull = n128, n128
    else:
        TN = 256
        Nfull = _round_up(n128, TN)

    m128 = _round_up(max(M, 8), LANE)
    k128 = _round_up(K, LANE)
    tm_cands = (512, 256, 128) if num_cores >= 2 else (1024, 512, 256, 128)

    def fits(tm, tk_lanes, single_k):
        a = 2 * tm * tk_lanes * 2                 # bf16 A tile, double-buffered
        b = 2 * tk_lanes * TN * 2                 # bf16 W tile, double-buffered
        o = 2 * tm * TN * 2                       # bf16 out tile, double-buffered
        acc = 0 if single_k else tm * TN * 4      # f32 accumulator scratch
        return a + b + o + acc + 2 * TN * 4 <= budget

    for cand in tm_cands:
        tm = min(cand, m128)
        mp = _round_up(M, tm)
        if mp - m128 > m128 // 8:                 # >12.5% extra padding waste
            continue
        if num_cores >= 2:
            want = min(num_cores, m128 // LANE)
            if want >= 2 and mp // tm < want:     # give every TensorCore a tile
                continue
        # Single K step first: weights stay VMEM-resident across all M tiles
        # and the kernel skips the accumulator zero-fill / round trip.
        if fits(tm, k128, True):
            return tm, mp, K, K, TN, Nfull, True
        # Otherwise tile K (multiple of 128) as the innermost reduction.
        for tk in (512, 256, 128):
            if k128 % tk == 0 and fits(tm, tk, False):
                return tm, mp, tk, k128, TN, Nfull, False

    # Conservative fallback (practically unreachable).
    tm = min(128, m128)
    mp = _round_up(M, tm)
    if K <= 128:
        return tm, mp, K, K, TN, Nfull, True
    return tm, mp, 128, k128, TN, Nfull, False


# ---------------------------------------------------------------------------
# Pallas kernels: GEMM + per-channel shift (+ReLU) epilogue
# ---------------------------------------------------------------------------
def _mm_shift_act_single_k_kernel(a_ref, b_ref, shift_ref, o_ref, *, relu):
    """Single K step: out = maybe_relu(A @ B + shift), no accumulator."""
    out = jnp.dot(a_ref[...], b_ref[...], preferred_element_type=jnp.float32)
    out = out + shift_ref[...]
    if relu:
        out = jnp.maximum(out, 0.0)
    o_ref[...] = out.astype(o_ref.dtype)


def _mm_shift_act_kernel(a_ref, b_ref, shift_ref, o_ref, acc_ref, *, relu):
    """Tiled-K reduction: grid = (M tiles, N tiles, K tiles)."""
    k = pl.program_id(2)

    @pl.when(k == 0)
    def _():
        acc_ref[...] = jnp.zeros_like(acc_ref)

    acc_ref[...] += jnp.dot(a_ref[...], b_ref[...],
                            preferred_element_type=jnp.float32)

    @pl.when(k == pl.num_programs(2) - 1)
    def _():
        out = acc_ref[...] + shift_ref[...]
        if relu:
            out = jnp.maximum(out, 0.0)
        o_ref[...] = out.astype(o_ref.dtype)


def matmul_shift_act(a, b, shift, *, relu, out_dtype=jnp.bfloat16):
    """Fused (A @ B) + shift (+ReLU) with bf16 operands / f32 accumulation."""
    M, K = a.shape
    K2, N = b.shape
    assert K == K2

    vmem_limit, num_cores = _tpu_config()
    TM, Mp, TK, Kp, TN, Nfull, single_k = _select_tiles(
        M, K, N, vmem_limit, num_cores)

    a = a.astype(jnp.bfloat16)
    b = b.astype(jnp.bfloat16)
    shift = shift.astype(jnp.float32)

    if Nfull != N:
        b = jnp.pad(b, ((0, 0), (0, Nfull - N)))
        shift = jnp.pad(shift, (0, Nfull - N))
    if Kp != K:
        a = jnp.pad(a, ((0, 0), (0, Kp - K)))
        b = jnp.pad(b, ((0, Kp - K), (0, 0)))
    if Mp != M:
        a = jnp.pad(a, ((0, Mp - M), (0, 0)))

    shift2 = shift.reshape(1, Nfull)

    if single_k:
        kern = functools.partial(_mm_shift_act_single_k_kernel, relu=relu)
        grid = (Mp // TM, Nfull // TN)
        in_specs = [
            pl.BlockSpec((TM, Kp), lambda i, j: (i, 0)),    # A tile
            pl.BlockSpec((Kp, TN), lambda i, j: (0, j)),    # W column block
            pl.BlockSpec((1, TN), lambda i, j: (0, j)),     # per-channel shift
        ]
        out_specs = pl.BlockSpec((TM, TN), lambda i, j: (i, j))
        scratch_shapes = []
        dims = ("parallel", "parallel")
    else:
        kern = functools.partial(_mm_shift_act_kernel, relu=relu)
        grid = (Mp // TM, Nfull // TN, Kp // TK)
        in_specs = [
            pl.BlockSpec((TM, TK), lambda i, j, k: (i, k)),
            pl.BlockSpec((TK, TN), lambda i, j, k: (k, j)),
            pl.BlockSpec((1, TN), lambda i, j, k: (0, j)),
        ]
        out_specs = pl.BlockSpec((TM, TN), lambda i, j, k: (i, j))
        scratch_shapes = [pltpu.VMEM((TM, TN), jnp.float32)]
        dims = ("parallel", "parallel", "arbitrary")

    out = pl.pallas_call(
        kern,
        out_shape=jax.ShapeDtypeStruct((Mp, Nfull), out_dtype),
        grid=grid,
        in_specs=in_specs,
        out_specs=out_specs,
        scratch_shapes=scratch_shapes,
        compiler_params=pltpu.CompilerParams(
            dimension_semantics=dims,
            vmem_limit_bytes=vmem_limit),
    )(a, b, shift2)

    if Mp != M or Nfull != N:
        out = out[:M, :N]
    return out


# ---------------------------------------------------------------------------
# Convolution glue (patch extraction in JAX, GEMM + BN + ReLU in Pallas)
# ---------------------------------------------------------------------------
def _im2col(x, kh, kw, stride, pad, dil):
    """NHWC patch extraction (operands already bf16 to halve HBM traffic)."""
    # TODO(synk): fold the kh*kw taps into the Pallas K-reduction (in-kernel
    # im2col via manual DMA of shifted NHWC windows) so the kh*kw-wider patch
    # matrix is never materialised in HBM.
    B, H, W, C = x.shape
    xp = jnp.pad(x, ((0, 0), (pad, pad), (pad, pad), (0, 0)))
    Hout = (H + 2 * pad - dil * (kh - 1) - 1) // stride + 1
    Wout = (W + 2 * pad - dil * (kw - 1) - 1) // stride + 1
    cols = []
    for i in range(kh):
        for j in range(kw):
            cols.append(xp[:, i * dil:i * dil + (Hout - 1) * stride + 1:stride,
                           j * dil:j * dil + (Wout - 1) * stride + 1:stride, :])
    return jnp.concatenate(cols, axis=-1), Hout, Wout


def basic_conv2d_forward_nhwc(params, x_nhwc, *, stride=1, padding=0,
                              dilation=1, out_dtype=jnp.bfloat16):
    """NHWC entry point (use this end-to-end to avoid per-layer transposes)."""
    w = params['w']                                   # (kh, kw, cin, cout) HWIO
    kh, kw, cin, cout = w.shape

    # Fold the BN affine: scale into the weights, shift into the epilogue.
    scale = params['gamma'] / jnp.sqrt(params['var'] + BN_EPS)
    shift = params['beta'] - params['mean'] * scale
    w_f = w * scale                                   # per-output-channel

    x = x_nhwc.astype(jnp.bfloat16)
    B, H, W_, _ = x.shape

    if kh == 1 and kw == 1 and stride == 1 and padding == 0:
        patches, Hout, Wout = x, H, W_                # 1x1: no im2col needed
    else:
        patches, Hout, Wout = _im2col(x, kh, kw, stride, padding, dilation)

    A = patches.reshape(B * Hout * Wout, kh * kw * cin)
    Bm = w_f.reshape(kh * kw * cin, cout)
    y = matmul_shift_act(A, Bm, shift, relu=True, out_dtype=out_dtype)
    return y.reshape(B, Hout, Wout, cout)


def basic_conv2d_forward(params, x_nchw, *, stride=1, padding=0, dilation=1,
                         out_dtype=jnp.bfloat16):
    """BasicConv2d.forward with PyTorch's NCHW convention.

    NOTE: in a full network keep activations NHWC and call
    basic_conv2d_forward_nhwc directly; the transposes here exist only to
    match the single-layer PyTorch interface.
    """
    x = jnp.transpose(x_nchw, (0, 2, 3, 1))
    y = basic_conv2d_forward_nhwc(params, x, stride=stride, padding=padding,
                                  dilation=dilation, out_dtype=out_dtype)
    return jnp.transpose(y, (0, 3, 1, 2))             # back to NCHW


# ---------------------------------------------------------------------------
# Reference (same bf16 operand quantisation, plain XLA conv) and init
# ---------------------------------------------------------------------------
def basic_conv2d_reference(params, x_nchw, *, stride=1, padding=0, dilation=1):
    scale = params['gamma'] / jnp.sqrt(params['var'] + BN_EPS)
    shift = params['beta'] - params['mean'] * scale
    w_f = (params['w'] * scale).astype(jnp.bfloat16).astype(jnp.float32)
    xq = x_nchw.astype(jnp.bfloat16).astype(jnp.float32)
    y = lax.conv_general_dilated(
        xq, w_f, window_strides=(stride, stride),
        padding=[(padding, padding), (padding, padding)],
        rhs_dilation=(dilation, dilation),
        dimension_numbers=('NCHW', 'HWIO', 'NCHW'),
        precision=lax.Precision.HIGHEST)
    return jnp.maximum(y + shift[None, :, None, None], 0.0)


def init_basic_conv2d(key, in_planes, out_planes, kernel_size):
    k1, k2, k3, k4, k5 = jax.random.split(key, 5)
    fan_in = kernel_size * kernel_size * in_planes
    return dict(
        w=jax.random.normal(
            k1, (kernel_size, kernel_size, in_planes, out_planes),
            jnp.float32) / np.sqrt(fan_in),
        gamma=1.0 + 0.1 * jax.random.normal(k2, (out_planes,), jnp.float32),
        beta=0.1 * jax.random.normal(k3, (out_planes,), jnp.float32),
        mean=0.05 * jax.random.normal(k4, (out_planes,), jnp.float32),
        var=jnp.abs(1.0 + 0.1 * jax.random.normal(k5, (out_planes,),
                                                  jnp.float32)) + 0.5,
    )


# ---------------------------------------------------------------------------
if __name__ == "__main__":
    key = jax.random.PRNGKey(0)
    kx, kp1, kp2 = jax.random.split(key, 3)

    B, Cin, H, W = 2, 16, 16, 16
    Cout = 32
    x = jax.random.normal(kx, (B, Cin, H, W), jnp.float32)

    fwd = jax.jit(basic_conv2d_forward,
                  static_argnames=('stride', 'padding', 'dilation',
                                   'out_dtype'))

    # BasicConv2d(16, 32, kernel_size=3, padding=1)
    p3 = init_basic_conv2d(kp1, Cin, Cout, 3)
    out3 = jax.block_until_ready(fwd(p3, x, stride=1, padding=1, dilation=1))
    assert out3.shape == (B, Cout, H, W), out3.shape
    ref3 = basic_conv2d_reference(p3, x, stride=1, padding=1, dilation=1)
    np.testing.assert_allclose(np.asarray(out3.astype(jnp.float32)),
                               np.asarray(ref3), rtol=2e-2, atol=2e-2)

    # BasicConv2d(16, 32, kernel_size=3, padding=2, dilation=2)
    out3d = jax.block_until_ready(fwd(p3, x, stride=1, padding=2, dilation=2))
    assert out3d.shape == (B, Cout, H, W), out3d.shape
    ref3d = basic_conv2d_reference(p3, x, stride=1, padding=2, dilation=2)
    np.testing.assert_allclose(np.asarray(out3d.astype(jnp.float32)),
                               np.asarray(ref3d), rtol=2e-2, atol=2e-2)

    # BasicConv2d(16, 32, kernel_size=1)  (fast path: no im2col)
    p1 = init_basic_conv2d(kp2, Cin, Cout, 1)
    out1 = jax.block_until_ready(fwd(p1, x, stride=1, padding=0, dilation=1))
    assert out1.shape == (B, Cout, H, W), out1.shape
    ref1 = basic_conv2d_reference(p1, x, stride=1, padding=0, dilation=1)
    np.testing.assert_allclose(np.asarray(out1.astype(jnp.float32)),
                               np.asarray(ref1), rtol=2e-2, atol=2e-2)

    assert bool(jnp.all(jnp.isfinite(out3.astype(jnp.float32))))
    assert bool(jnp.all(jnp.isfinite(out3d.astype(jnp.float32))))
    assert bool(jnp.all(jnp.isfinite(out1.astype(jnp.float32))))
    print("KERNEL_OK")
</pallas_src>

<mosaic_0001>
module attributes {stable_mosaic.version = 11 : i64} {
  func.func @_mm_shift_act_single_k_kernel(%arg0: i32, %arg1: i32, %arg2: memref<512x144xbf16, #tpu.memory_space<vmem>>, %arg3: memref<144x128xbf16, #tpu.memory_space<vmem>>, %arg4: memref<1x128xf32, #tpu.memory_space<vmem>>, %arg5: memref<512x128xbf16, #tpu.memory_space<vmem>>) attributes {dimension_semantics = [#tpu.dimension_semantics<parallel>, #tpu.dimension_semantics<parallel>], iteration_bounds = array<i64: 1, 1>, scalar_prefetch = 0 : i64, scratch_operands = 0 : i64, tpu.core_type = #tpu.core_type<tc>, window_params = [{transform_indices = @transform_0, window_bounds = array<i64: 512, 144>}, {transform_indices = @transform_1, window_bounds = array<i64: 144, 128>}, {transform_indices = @transform_2, window_bounds = array<i64: 1, 128>}, {transform_indices = @transform_3, window_bounds = array<i64: 512, 128>}]} {
    %c0 = arith.constant 0 : index
    %c0_0 = arith.constant 0 : index
    %0 = vector.load %arg2[%c0, %c0_0] : memref<512x144xbf16, #tpu.memory_space<vmem>>, vector<512x144xbf16>
    %c0_1 = arith.constant 0 : index
    %c0_2 = arith.constant 0 : index
    %1 = vector.load %arg3[%c0_1, %c0_2] : memref<144x128xbf16, #tpu.memory_space<vmem>>, vector<144x128xbf16>
    %cst = arith.constant dense<0.000000e+00> : vector<512x128xf32>
    %2 = tpu.matmul %0, %1, %cst {dimension_numbers = #tpu.dot_dimension_numbers<[1], [0], [0], [1], [0, 0, 1, 1], [], []>} : vector<512x144xbf16>, vector<144x128xbf16>, vector<512x128xf32> -> vector<512x128xf32>
    %c0_3 = arith.constant 0 : index
    %c0_4 = arith.constant 0 : index
    %3 = vector.load %arg4[%c0_3, %c0_4] : memref<1x128xf32, #tpu.memory_space<vmem>>, vector<1x128xf32>
    %4 = vector.broadcast %3 : vector<1x128xf32> to vector<512x128xf32>
    %5 = arith.addf %2, %4 : vector<512x128xf32>
    %cst_5 = arith.constant 0.000000e+00 : f32
    %6 = vector.broadcast %cst_5 : f32 to vector<512x128xf32>
    %7 = arith.maximumf %5, %6 : vector<512x128xf32>
    %8 = arith.truncf %7 : vector<512x128xf32> to vector<512x128xbf16>
    %c0_6 = arith.constant 0 : index
    %c0_7 = arith.constant 0 : index
    %9 = vector.load %arg5[%c0_6, %c0_7] : memref<512x128xbf16, #tpu.memory_space<vmem>>, vector<512x128xbf16>
    tpu.vector_store %arg5[%c0_6, %c0_7], %8 {strides = array<i32>} : memref<512x128xbf16, #tpu.memory_space<vmem>>, vector<512x128xbf16>,
    return
  }
  func.func @transform_0(%arg0: i32, %arg1: i32) -> (i32, i32) {
    %c0_i32 = arith.constant 0 : i32
    %c0_i32_0 = arith.constant 0 : i32
    return %arg0, %c0_i32 : i32, i32
  }
  func.func @transform_1(%arg0: i32, %arg1: i32) -> (i32, i32) {
    %c0_i32 = arith.constant 0 : i32
    %c0_i32_0 = arith.constant 0 : i32
    return %c0_i32, %arg1 : i32, i32
  }
  func.func @transform_2(%arg0: i32, %arg1: i32) -> (i32, i32) {
    %c0_i32 = arith.constant 0 : i32
    %c0_i32_0 = arith.constant 0 : i32
    return %c0_i32, %arg1 : i32, i32
  }
  func.func @transform_3(%arg0: i32, %arg1: i32) -> (i32, i32) {
    %c0_i32 = arith.constant 0 : i32
    return %arg0, %arg1 : i32, i32
  }
}

</mosaic_0001>

<llo_original>
// kernel: basic_conv2d_forward.1
$region0: #{basic_conv2d_forward.1}
  #allocation0 [shape = 'u32[]', space=smem, size = 0x4, offset = 0x4, fixed_abs, tag = 'smem constant byte address 0x4 - core index']
  #allocation1 [shape = 'u32[144,128]{1,0:T(1,128)}', space=vmem, size = 0x12000, scoped, tag = 'internal scratch']
  %s0 = inlined_call_operand.vmem [shape: bf16[512,144], index: 0, kind: input, shape index: {}]
  %s1 = inlined_call_operand.vmem [shape: bf16[144,128], index: 1, kind: input, shape index: {}]
  %s2 = inlined_call_operand.vmem [shape: f32[1,128], index: 2, kind: input, shape index: {}]
  %s3 = inlined_call_operand.hbm [shape: bf16[512,128], index: 3, kind: output, shape index: {}]
  %s4 = sld [smem:[#allocation0]]
  $region22: #{basic_conv2d_forward.1} parent=0
    _
  %s6 = ssub.s32 1, %s4
  %s7 = scalar_select 0, %s6, %s4
  $region1: #{basic_conv2d_forward.1} parent=0
    #allocation2 [shape = 'u8[131072]{0}', space=vmem, size = 0x20000, scoped, tag = 'output window, operand 0, single buffered']
    #allocation3 [shape = 's32[1]{0}', space=sflag, size = 0x4, scoped, tag = 'scoped memory for basic_conv2d_forward.1']
    %8 = vsyncpa [#allocation3], 0
    // Predicated region
    $region2: #{basic_conv2d_forward.1} parent=1 // pred_check
      _
    $region3: #{basic_conv2d_forward.1} parent=1 // pred_check_branch
      %10 = sbr.rel (0) target = $region5
    $region4: #{basic_conv2d_forward.1} parent=1 // pred_region
      _
    $region5: #{basic_conv2d_forward.1} parent=1 // pred_fallthru
      _
    // Predicated region
    $region6: #{basic_conv2d_forward.1} parent=1 // pred_check
      _
    $region7: #{basic_conv2d_forward.1} parent=1 // pred_check_branch
      %12 = sbr.rel (0) target = $region9
    $region8: #{basic_conv2d_forward.1} parent=1 // pred_region
      _
    $region9: #{basic_conv2d_forward.1} parent=1 // pred_fallthru
      _
    // Predicated region
    $region10: #{basic_conv2d_forward.1} parent=1 // pred_check
      _
    $region11: #{basic_conv2d_forward.1} parent=1 // pred_check_branch
      %14 = sbr.rel (0) target = $region13
    $region12: #{basic_conv2d_forward.1} parent=1 // pred_region
      _
    $region13: #{basic_conv2d_forward.1} parent=1 // pred_fallthru
      _
    %v16 = vld [vmem:[%s0] sm:$0xff]
    %v17 = vld [vmem:[%s0 + $0x8] sm:$0xff]
    %v18 = vld [vmem:[%s0 + $0x10] sm:$0xff]
    %v19 = vld [vmem:[%s0 + $0x18] sm:$0xff]
    %v20 = vld [vmem:[%s0 + $0x20] sm:$0xff]
    %v21 = vld [vmem:[%s0 + $0x28] sm:$0xff]
    %v22 = vld [vmem:[%s0 + $0x30] sm:$0xff]
    %v23 = vld [vmem:[%s0 + $0x38] sm:$0xff]
    %v24 = vld [vmem:[%s0 + $0x40] sm:$0xff]
    %v25 = vld [vmem:[%s0 + $0x48] sm:$0xff]
    %v26 = vld [vmem:[%s0 + $0x50] sm:$0xff]
    %v27 = vld [vmem:[%s0 + $0x58] sm:$0xff]
    %v28 = vld [vmem:[%s0 + $0x60] sm:$0xff]
    %v29 = vld [vmem:[%s0 + $0x68] sm:$0xff]
    %v30 = vld [vmem:[%s0 + $0x70] sm:$0xff]
    %v31 = vld [vmem:[%s0 + $0x78] sm:$0xff]
    %v32 = vld [vmem:[%s0 + $0x80] sm:$0xff]
    %v33 = vld [vmem:[%s0 + $0x88] sm:$0xff]
    %v34 = vld [vmem:[%s0 + $0x90] sm:$0xff]
    %v35 = vld [vmem:[%s0 + $0x98] sm:$0xff]
    %v36 = vld [vmem:[%s0 + $0xa0] sm:$0xff]
    %v37 = vld [vmem:[%s0 + $0xa8] sm:$0xff]
    %v38 = vld [vmem:[%s0 + $0xb0] sm:$0xff]
    %v39 = vld [vmem:[%s0 + $0xb8] sm:$0xff]
    %v40 = vld [vmem:[%s0 + $0xc0] sm:$0xff]
    %v41 = vld [vmem:[%s0 + $0xc8] sm:$0xff]
    %v42 = vld [vmem:[%s0 + $0xd0] sm:$0xff]
    %v43 = vld [vmem:[%s0 + $0xd8] sm:$0xff]
    %v44 = vld [vmem:[%s0 + $0xe0] sm:$0xff]
    %v45 = vld [vmem:[%s0 + $0xe8] sm:$0xff]
    %v46 = vld [vmem:[%s0 + $0xf0] sm:$0xff]
    %v47 = vld [vmem:[%s0 + $0xf8] sm:$0xff]
    %v48 = vld [vmem:[%s0 + $0x100] sm:$0xff]
    %v49 = vld [vmem:[%s0 + $0x108] sm:$0xff]
    %v50 = vld [vmem:[%s0 + $0x110] sm:$0xff]
    %v51 = vld [vmem:[%s0 + $0x118] sm:$0xff]
    %v52 = vld [vmem:[%s0 + $0x120] sm:$0xff]
    %v53 = vld [vmem:[%s0 + $0x128] sm:$0xff]
    %v54 = vld [vmem:[%s0 + $0x130] sm:$0xff]
    %v55 = vld [vmem:[%s0 + $0x138] sm:$0xff]
    %v56 = vld [vmem:[%s0 + $0x140] sm:$0xff]
    %v57 = vld [vmem:[%s0 + $0x148] sm:$0xff]
    %v58 = vld [vmem:[%s0 + $0x150] sm:$0xff]
    %v59 = vld [vmem:[%s0 + $0x158] sm:$0xff]
    %v60 = vld [vmem:[%s0 + $0x160] sm:$0xff]
    %v61 = vld [vmem:[%s0 + $0x168] sm:$0xff]
    %v62 = vld [vmem:[%s0 + $0x170] sm:$0xff]
    %v63 = vld [vmem:[%s0 + $0x178] sm:$0xff]
    %v64 = vld [vmem:[%s0 + $0x180] sm:$0xff]
    %v65 = vld [vmem:[%s0 + $0x188] sm:$0xff]
    %v66 = vld [vmem:[%s0 + $0x190] sm:$0xff]
    %v67 = vld [vmem:[%s0 + $0x198] sm:$0xff]
    %v68 = vld [vmem:[%s0 + $0x1a0] sm:$0xff]
    %v69 = vld [vmem:[%s0 + $0x1a8] sm:$0xff]
    %v70 = vld [vmem:[%s0 + $0x1b0] sm:$0xff]
    %v71 = vld [vmem:[%s0 + $0x1b8] sm:$0xff]
    %v72 = vld [vmem:[%s0 + $0x1c0] sm:$0xff]
    %v73 = vld [vmem:[%s0 + $0x1c8] sm:$0xff]
    %v74 = vld [vmem:[%s0 + $0x1d0] sm:$0xff]
    %v75 = vld [vmem:[%s0 + $0x1d8] sm:$0xff]
    %v76 = vld [vmem:[%s0 + $0x1e0] sm:$0xff]
    %v77 = vld [vmem:[%s0 + $0x1e8] sm:$0xff]
    %v78 = vld [vmem:[%s0 + $0x1f0] sm:$0xff]
    %v79 = vld [vmem:[%s0 + $0x1f8] sm:$0xff]
    %v80 = vld [vmem:[%s1] sm:$0xf]
    %v81 = vld [vmem:[%s1 + $0x4] sm:$0xf]
    %v82 = vld [vmem:[%s1 + $0x8] sm:$0xf]
    %v83 = vld [vmem:[%s1 + $0xc] sm:$0xf]
    %v84 = vld [vmem:[%s1 + $0x10] sm:$0xf]
    %v85 = vld [vmem:[%s1 + $0x14] sm:$0xf]
    %v86 = vld [vmem:[%s1 + $0x18] sm:$0xf]
    %v87 = vld [vmem:[%s1 + $0x1c] sm:$0xf]
    %v88 = vld [vmem:[%s1 + $0x20] sm:$0xf]
    %v89 = vld [vmem:[%s1 + $0x24] sm:$0xf]
    %v90 = vld [vmem:[%s1 + $0x28] sm:$0xf]
    %v91 = vld [vmem:[%s1 + $0x2c] sm:$0xf]
    %v92 = vld [vmem:[%s1 + $0x30] sm:$0xf]
    %v93 = vld [vmem:[%s1 + $0x34] sm:$0xf]
    %v94 = vld [vmem:[%s1 + $0x38] sm:$0xf]
    %v95 = vld [vmem:[%s1 + $0x3c] sm:$0xf]
    %v96 = vld [vmem:[%s1 + $0x40] sm:$0xf]
    %v97 = vld [vmem:[%s1 + $0x44] sm:$0xf]
    %v98 = vld [vmem:[%s2] sm:$0x1]
    %v100 = vlaneseq
    %v101 = vshrl.u32 %v100, 7
    %v102 = vsub.s32 0, %v101
    %v103 = vrot.slane %v98, %v102
    %v169 = vunpack.c.l.b16 %v16
    %v170 = vunpack.c.h.b16 %v16
    %v171 = vunpack.c.l.b16 %v17
    %v172 = vunpack.c.h.b16 %v17
    %v173 = vunpack.c.l.b16 %v18
    %v174 = vunpack.c.h.b16 %v18
    %v175 = vunpack.c.l.b16 %v19
    %v176 = vunpack.c.h.b16 %v19
    %v177 = vunpack.c.l.b16 %v20
    %v178 = vunpack.c.h.b16 %v20
    %v179 = vunpack.c.l.b16 %v21
    %v180 = vunpack.c.h.b16 %v21
    %v181 = vunpack.c.l.b16 %v22
    %v182 = vunpack.c.h.b16 %v22
    %v183 = vunpack.c.l.b16 %v23
    %v184 = vunpack.c.h.b16 %v23
    %v185 = vunpack.c.l.b16 %v24
    %v186 = vunpack.c.h.b16 %v24
    %v187 = vunpack.c.l.b16 %v25
    %v188 = vunpack.c.h.b16 %v25
    %v189 = vunpack.c.l.b16 %v26
    %v190 = vunpack.c.h.b16 %v26
    %v191 = vunpack.c.l.b16 %v27
    %v192 = vunpack.c.h.b16 %v27
    %v193 = vunpack.c.l.b16 %v28
    %v194 = vunpack.c.h.b16 %v28
    %v195 = vunpack.c.l.b16 %v29
    %v196 = vunpack.c.h.b16 %v29
    %v197 = vunpack.c.l.b16 %v30
    %v198 = vunpack.c.h.b16 %v30
    %v199 = vunpack.c.l.b16 %v31
    %v200 = vunpack.c.h.b16 %v31
    %v201 = vunpack.c.l.b16 %v32
    %v202 = vunpack.c.h.b16 %v32
    %v203 = vunpack.c.l.b16 %v33
    %v204 = vunpack.c.h.b16 %v33
    %v205 = vunpack.c.l.b16 %v34
    %v206 = vunpack.c.h.b16 %v34
    %v207 = vunpack.c.l.b16 %v35
    %v208 = vunpack.c.h.b16 %v35
    %v209 = vunpack.c.l.b16 %v36
    %v210 = vunpack.c.h.b16 %v36
    %v211 = vunpack.c.l.b16 %v37
    %v212 = vunpack.c.h.b16 %v37
    %v213 = vunpack.c.l.b16 %v38
    %v214 = vunpack.c.h.b16 %v38
    %v215 = vunpack.c.l.b16 %v39
    %v216 = vunpack.c.h.b16 %v39
    %v217 = vunpack.c.l.b16 %v40
    %v218 = vunpack.c.h.b16 %v40
    %v219 = vunpack.c.l.b16 %v41
    %v220 = vunpack.c.h.b16 %v41
    %v221 = vunpack.c.l.b16 %v42
    %v222 = vunpack.c.h.b16 %v42
    %v223 = vunpack.c.l.b16 %v43
    %v224 = vunpack.c.h.b16 %v43
    %v225 = vunpack.c.l.b16 %v44
    %v226 = vunpack.c.h.b16 %v44
    %v227 = vunpack.c.l.b16 %v45
    %v228 = vunpack.c.h.b16 %v45
    %v229 = vunpack.c.l.b16 %v46
    %v230 = vunpack.c.h.b16 %v46
    %v231 = vunpack.c.l.b16 %v47
    %v232 = vunpack.c.h.b16 %v47
    %v233 = vunpack.c.l.b16 %v48
    %v234 = vunpack.c.h.b16 %v48
    %v235 = vunpack.c.l.b16 %v49
    %v236 = vunpack.c.h.b16 %v49
    %v237 = vunpack.c.l.b16 %v50
    %v238 = vunpack.c.h.b16 %v50
    %v239 = vunpack.c.l.b16 %v51
    %v240 = vunpack.c.h.b16 %v51
    %v241 = vunpack.c.l.b16 %v52
    %v242 = vunpack.c.h.b16 %v52
    %v243 = vunpack.c.l.b16 %v53
    %v244 = vunpack.c.h.b16 %v53
    %v245 = vunpack.c.l.b16 %v54
    %v246 = vunpack.c.h.b16 %v54
    %v247 = vunpack.c.l.b16 %v55
    %v248 = vunpack.c.h.b16 %v55
    %v249 = vunpack.c.l.b16 %v56
    %v250 = vunpack.c.h.b16 %v56
    %v251 = vunpack.c.l.b16 %v57
    %v252 = vunpack.c.h.b16 %v57
    %v253 = vunpack.c.l.b16 %v58
    %v254 = vunpack.c.h.b16 %v58
    %v255 = vunpack.c.l.b16 %v59
    %v256 = vunpack.c.h.b16 %v59
    %v257 = vunpack.c.l.b16 %v60
    %v258 = vunpack.c.h.b16 %v60
    %v259 = vunpack.c.l.b16 %v61
    %v260 = vunpack.c.h.b16 %v61
    %v261 = vunpack.c.l.b16 %v62
    %v262 = vunpack.c.h.b16 %v62
    %v263 = vunpack.c.l.b16 %v63
    %v264 = vunpack.c.h.b16 %v63
    %v265 = vunpack.c.l.b16 %v64
    %v266 = vunpack.c.h.b16 %v64
    %v267 = vunpack.c.l.b16 %v65
    %v268 = vunpack.c.h.b16 %v65
    %v269 = vunpack.c.l.b16 %v66
    %v270 = vunpack.c.h.b16 %v66
    %v271 = vunpack.c.l.b16 %v67
    %v272 = vunpack.c.h.b16 %v67
    %v273 = vunpack.c.l.b16 %v68
    %v274 = vunpack.c.h.b16 %v68
    %v275 = vunpack.c.l.b16 %v69
    %v276 = vunpack.c.h.b16 %v69
    %v277 = vunpack.c.l.b16 %v70
    %v278 = vunpack.c.h.b16 %v70
    %v279 = vunpack.c.l.b16 %v71
    %v280 = vunpack.c.h.b16 %v71
    %v281 = vunpack.c.l.b16 %v72
    %v282 = vunpack.c.h.b16 %v72
    %v283 = vunpack.c.l.b16 %v73
    %v284 = vunpack.c.h.b16 %v73
    %v285 = vunpack.c.l.b16 %v74
    %v286 = vunpack.c.h.b16 %v74
    %v287 = vunpack.c.l.b16 %v75
    %v288 = vunpack.c.h.b16 %v75
    %v289 = vunpack.c.l.b16 %v76
    %v290 = vunpack.c.h.b16 %v76
    %v291 = vunpack.c.l.b16 %v77
    %v292 = vunpack.c.h.b16 %v77
    %v293 = vunpack.c.l.b16 %v78
    %v294 = vunpack.c.h.b16 %v78
    %v295 = vunpack.c.l.b16 %v79
    %v296 = vunpack.c.h.b16 %v79
    %v297 = vpack.c.b16 %v171, %v169
    %v298 = vpack.c.b16 %v172, %v170
    %v299 = vpack.c.b16 %v175, %v173
    %v300 = vpack.c.b16 %v176, %v174
    %v301 = vpack.c.b16 %v179, %v177
    %v302 = vpack.c.b16 %v180, %v178
    %v303 = vpack.c.b16 %v183, %v181
    %v304 = vpack.c.b16 %v184, %v182
    %v305 = vpack.c.b16 %v187, %v185
    %v306 = vpack.c.b16 %v188, %v186
    %v307 = vpack.c.b16 %v191, %v189
    %v308 = vpack.c.b16 %v192, %v190
    %v309 = vpack.c.b16 %v195, %v193
    %v310 = vpack.c.b16 %v196, %v194
    %v311 = vpack.c.b16 %v199, %v197
    %v312 = vpack.c.b16 %v200, %v198
    %v313 = vpack.c.b16 %v203, %v201
    %v314 = vpack.c.b16 %v204, %v202
    %v315 = vpack.c.b16 %v207, %v205
    %v316 = vpack.c.b16 %v208, %v206
    %v317 = vpack.c.b16 %v211, %v209
    %v318 = vpack.c.b16 %v212, %v210
    %v319 = vpack.c.b16 %v215, %v213
    %v320 = vpack.c.b16 %v216, %v214
    %v321 = vpack.c.b16 %v219, %v217
    %v322 = vpack.c.b16 %v220, %v218
    %v323 = vpack.c.b16 %v223, %v221
    %v324 = vpack.c.b16 %v224, %v222
    %v325 = vpack.c.b16 %v227, %v225
    %v326 = vpack.c.b16 %v228, %v226
    %v327 = vpack.c.b16 %v231, %v229
    %v328 = vpack.c.b16 %v232, %v230
    %v329 = vpack.c.b16 %v235, %v233
    %v330 = vpack.c.b16 %v236, %v234
    %v331 = vpack.c.b16 %v239, %v237
    %v332 = vpack.c.b16 %v240, %v238
    %v333 = vpack.c.b16 %v243, %v241
    %v334 = vpack.c.b16 %v244, %v242
    %v335 = vpack.c.b16 %v247, %v245
    %v336 = vpack.c.b16 %v248, %v246
    %v337 = vpack.c.b16 %v251, %v249
    %v338 = vpack.c.b16 %v252, %v250
    %v339 = vpack.c.b16 %v255, %v253
    %v340 = vpack.c.b16 %v256, %v254
    %v341 = vpack.c.b16 %v259, %v257
    %v342 = vpack.c.b16 %v260, %v258
    %v343 = vpack.c.b16 %v263, %v261
    %v344 = vpack.c.b16 %v264, %v262
    %v345 = vpack.c.b16 %v267, %v265
    %v346 = vpack.c.b16 %v268, %v266
    %v347 = vpack.c.b16 %v271, %v269
    %v348 = vpack.c.b16 %v272, %v270
    %v349 = vpack.c.b16 %v275, %v273
    %v350 = vpack.c.b16 %v276, %v274
    %v351 = vpack.c.b16 %v279, %v277
    %v352 = vpack.c.b16 %v280, %v278
    %v353 = vpack.c.b16 %v283, %v281
    %v354 = vpack.c.b16 %v284, %v282
    %v355 = vpack.c.b16 %v287, %v285
    %v356 = vpack.c.b16 %v288, %v286
    %v357 = vpack.c.b16 %v291, %v289
    %v358 = vpack.c.b16 %v292, %v290
    %v359 = vpack.c.b16 %v295, %v293
    %v360 = vpack.c.b16 %v296, %v294
    %v411 = vunpack.c.l.b16 %v80
    %v412 = vunpack.c.l.b16 %v81
    %v413 = vunpack.c.l.b16 %v82
    %v414 = vunpack.c.l.b16 %v83
    %v415 = vunpack.c.l.b16 %v84
    %v416 = vunpack.c.l.b16 %v85
    %v417 = vunpack.c.l.b16 %v86
    %v418 = vunpack.c.l.b16 %v87
    %v419 = vunpack.c.l.b16 %v88
    %v420 = vunpack.c.l.b16 %v89
    %v421 = vunpack.c.l.b16 %v90
    %v422 = vunpack.c.l.b16 %v91
    %v423 = vunpack.c.l.b16 %v92
    %v424 = vunpack.c.l.b16 %v93
    %v425 = vunpack.c.l.b16 %v94
    %v426 = vunpack.c.l.b16 %v95
    %v427 = vunpack.c.l.b16 %v96
    %v428 = vunpack.c.l.b16 %v97
    %v429 = vpack.c.b16 %v412, %v411
    %v430 = vpack.c.b16 %v414, %v413
    %v431 = vpack.c.b16 %v416, %v415
    %v432 = vpack.c.b16 %v418, %v417
    %v433 = vpack.c.b16 %v420, %v419
    %v434 = vpack.c.b16 %v422, %v421
    %v435 = vpack.c.b16 %v424, %v423
    %v436 = vpack.c.b16 %v426, %v425
    %v437 = vpack.c.b16 %v428, %v427
    %vm447 = vcmask 130048
    %v449 = vsel %vm447, %v298, 0
    %v452 = vsel %vm447, %v300, 0
    %v455 = vsel %vm447, %v302, 0
    %v458 = vsel %vm447, %v304, 0
    %v461 = vsel %vm447, %v306, 0
    %v464 = vsel %vm447, %v308, 0
    %v467 = vsel %vm447, %v310, 0
    %v470 = vsel %vm447, %v312, 0
    %v473 = vsel %vm447, %v314, 0
    %v476 = vsel %vm447, %v316, 0
    %v479 = vsel %vm447, %v318, 0
    %v482 = vsel %vm447, %v320, 0
    %v485 = vsel %vm447, %v322, 0
    %v488 = vsel %vm447, %v324, 0
    %v491 = vsel %vm447, %v326, 0
    %v494 = vsel %vm447, %v328, 0
    %v497 = vsel %vm447, %v330, 0
    %v500 = vsel %vm447, %v332, 0
    %v503 = vsel %vm447, %v334, 0
    %v506 = vsel %vm447, %v336, 0
    %v509 = vsel %vm447, %v338, 0
    %v512 = vsel %vm447, %v340, 0
    %v515 = vsel %vm447, %v342, 0
    %v518 = vsel %vm447, %v344, 0
    %v521 = vsel %vm447, %v346, 0
    %v524 = vsel %vm447, %v348, 0
    %v527 = vsel %vm447, %v350, 0
    %v530 = vsel %vm447, %v352, 0
    %v533 = vsel %vm447, %v354, 0
    %v536 = vsel %vm447, %v356, 0
    %v539 = vsel %vm447, %v358, 0
    %v542 = vsel %vm447, %v360, 0
    %544 = vmatprep.subr.bf16.mxu0 0
    %545 = vmatpush1.bf16.msra.mxu0 %v429
    %546 = vmatprep.subr.bf16.mxu0 0
    %547 = vmatpush1.bf16.msra.mxu0 %v430
    %548 = vmatprep.subr.bf16.mxu0 0
    %549 = vmatpush1.bf16.msra.mxu0 %v431
    %550 = vmatprep.subr.bf16.mxu0 0
    %551 = vmatpush1.bf16.msra.mxu0 %v432
    %552 = vmatprep.subr.bf16.mxu0 0
    %553 = vmatpush1.bf16.msra.mxu0 %v433
    %554 = vmatprep.subr.bf16.mxu0 0
    %555 = vmatpush1.bf16.msra.mxu0 %v434
    %556 = vmatprep.subr.bf16.mxu0 0
    %557 = vmatpush1.bf16.msra.mxu0 %v435
    %558 = vmatprep.subr.bf16.mxu0 0
    %559 = vmatpush1.bf16.msra.mxu0 %v436
    %560 = vmatprep.subr.bf16.mxu0 0
    %561 = vmatpush1.bf16.msra.mxu0 %v437
    %562 = vmatprep.subr.bf16.mxu0 0
    %563 = vmatpush1.bf16.msra.mxu0 0
    %564 = vmatprep.subr.bf16.mxu0 0
    %565 = vmatpush1.bf16.msra.mxu0 0
    %566 = vmatprep.subr.bf16.mxu0 0
    %567 = vmatpush1.bf16.msra.mxu0 0
    %568 = vmatprep.subr.bf16.mxu0 0
    %569 = vmatpush1.bf16.msra.mxu0 0
    %570 = vmatprep.subr.bf16.mxu0 0
    %571 = vmatpush1.bf16.msra.mxu0 0
    %572 = vmatprep.subr.bf16.mxu0 0
    %573 = vmatpush1.bf16.msra.mxu0 0
    %574 = vmatprep.subr.bf16.mxu0 0
    %575 = vmatpush1.bf16.msra.mxu0 0
    %576 = vmatprep.mubr.bf16.mxu0 %v449
    %577 = vmatmul.mubr.bf16.gmra.mrb[0].mxu0 %v297
    %v578 = vpop.f32.mrb[0].mxu0
    %v579 = vadd.f32 %v103, %v578
    %v580 = vpop.f32.mrb[0].mxu0
    %v581 = vpop.f32.mrb[0].mxu0
    %v582 = vadd.f32 %v103, %v581
    %v583 = vpop.f32.mrb[0].mxu0
    %584 = vmatprep.mubr.bf16.mxu0 %v452
    %585 = vmatmul.mubr.bf16.gmra.mrb[0].mxu0 %v299
    %v586 = vpop.f32.mrb[0].mxu0
    %v587 = vadd.f32 %v103, %v586
    %v588 = vpop.f32.mrb[0].mxu0
    %v589 = vpop.f32.mrb[0].mxu0
    %v590 = vadd.f32 %v103, %v589
    %v591 = vpop.f32.mrb[0].mxu0
    %592 = vmatprep.mubr.bf16.mxu0 %v455
    %593 = vmatmul.mubr.bf16.gmra.mrb[0].mxu0 %v301
    %v594 = vpop.f32.mrb[0].mxu0
    %v595 = vadd.f32 %v103, %v594
    %v596 = vpop.f32.mrb[0].mxu0
    %v597 = vpop.f32.mrb[0].mxu0
    %v598 = vadd.f32 %v103, %v597
    %v599 = vpop.f32.mrb[0].mxu0
    %600 = vmatprep.mubr.bf16.mxu0 %v458
    %601 = vmatmul.mubr.bf16.gmra.mrb[0].mxu0 %v303
    %v602 = vpop.f32.mrb[0].mxu0
    %v603 = vadd.f32 %v103, %v602
    %v604 = vpop.f32.mrb[0].mxu0
    %v605 = vpop.f32.mrb[0].mxu0
    %v606 = vadd.f32 %v103, %v605
    %v607 = vpop.f32.mrb[0].mxu0
    %608 = vmatprep.mubr.bf16.mxu0 %v461
    %609 = vmatmul.mubr.bf16.gmra.mrb[0].mxu0 %v305
    %v610 = vpop.f32.mrb[0].mxu0
    %v611 = vadd.f32 %v103, %v610
    %v612 = vpop.f32.mrb[0].mxu0
    %v613 = vpop.f32.mrb[0].mxu0
    %v614 = vadd.f32 %v103, %v613
    %v615 = vpop.f32.mrb[0].mxu0
    %616 = vmatprep.mubr.bf16.mxu0 %v464
    %617 = vmatmul.mubr.bf16.gmra.mrb[0].mxu0 %v307
    %v618 = vpop.f32.mrb[0].mxu0
    %v619 = vadd.f32 %v103, %v618
    %v620 = vpop.f32.mrb[0].mxu0
    %v621 = vpop.f32.mrb[0].mxu0
    %v622 = vadd.f32 %v103, %v621
    %v623 = vpop.f32.mrb[0].mxu0
    %624 = vmatprep.mubr.bf16.mxu0 %v467
    %625 = vmatmul.mubr.bf16.gmra.mrb[0].mxu0 %v309
    %v626 = vpop.f32.mrb[0].mxu0
    %v627 = vadd.f32 %v103, %v626
    %v628 = vpop.f32.mrb[0].mxu0
    %v629 = vpop.f32.mrb[0].mxu0
    %v630 = vadd.f32 %v103, %v629
    %v631 = vpop.f32.mrb[0].mxu0
    %632 = vmatprep.mubr.bf16.mxu0 %v470
    %633 = vmatmul.mubr.bf16.gmra.mrb[0].mxu0 %v311
    %v634 = vpop.f32.mrb[0].mxu0
    %v635 = vadd.f32 %v103, %v634
    %v636 = vpop.f32.mrb[0].mxu0
    %v637 = vpop.f32.mrb[0].mxu0
    %v638 = vadd.f32 %v103, %v637
    %v639 = vpop.f32.mrb[0].mxu0
    %640 = vmatprep.mubr.bf16.mxu0 %v473
    %641 = vmatmul.mubr.bf16.gmra.mrb[0].mxu0 %v313
    %v642 = vpop.f32.mrb[0].mxu0
    %v643 = vadd.f32 %v103, %v642
    %v644 = vpop.f32.mrb[0].mxu0
    %v645 = vpop.f32.mrb[0].mxu0
    %v646 = vadd.f32 %v103, %v645
    %v647 = vpop.f32.mrb[0].mxu0
    %648 = vmatprep.mubr.bf16.mxu0 %v476
    %649 = vmatmul.mubr.bf16.gmra.mrb[0].mxu0 %v315
    %v650 = vpop.f32.mrb[0].mxu0
    %v651 = vadd.f32 %v103, %v650
    %v652 = vpop.f32.mrb[0].mxu0
    %v653 = vpop.f32.mrb[0].mxu0
    %v654 = vadd.f32 %v103, %v653
    %v655 = vpop.f32.mrb[0].mxu0
    %656 = vmatprep.mubr.bf16.mxu0 %v479
    %657 = vmatmul.mubr.bf16.gmra.mrb[0].mxu0 %v317
    %v658 = vpop.f32.mrb[0].mxu0
    %v659 = vadd.f32 %v103, %v658
    %v660 = vpop.f32.mrb[0].mxu0
    %v661 = vpop.f32.mrb[0].mxu0
    %v662 = vadd.f32 %v103, %v661
    %v663 = vpop.f32.mrb[0].mxu0
    %664 = vmatprep.mubr.bf16.mxu0 %v482
    %665 = vmatmul.mubr.bf16.gmra.mrb[0].mxu0 %v319
    %v666 = vpop.f32.mrb[0].mxu0
    %v667 = vadd.f32 %v103, %v666
    %v668 = vpop.f32.mrb[0].mxu0
    %v669 = vpop.f32.mrb[0].mxu0
    %v670 = vadd.f32 %v103, %v669
    %v671 = vpop.f32.mrb[0].mxu0
    %672 = vmatprep.mubr.bf16.mxu0 %v485
    %673 = vmatmul.mubr.bf16.gmra.mrb[0].mxu0 %v321
    %v674 = vpop.f32.mrb[0].mxu0
    %v675 = vadd.f32 %v103, %v674
    %v676 = vpop.f32.mrb[0].mxu0
    %v677 = vpop.f32.mrb[0].mxu0
    %v678 = vadd.f32 %v103, %v677
    %v679 = vpop.f32.mrb[0].mxu0
    %680 = vmatprep.mubr.bf16.mxu0 %v488
    %681 = vmatmul.mubr.bf16.gmra.mrb[0].mxu0 %v323
    %v682 = vpop.f32.mrb[0].mxu0
    %v683 = vadd.f32 %v103, %v682
    %v684 = vpop.f32.mrb[0].mxu0
    %v685 = vpop.f32.mrb[0].mxu0
    %v686 = vadd.f32 %v103, %v685
    %v687 = vpop.f32.mrb[0].mxu0
    %688 = vmatprep.mubr.bf16.mxu0 %v491
    %689 = vmatmul.mubr.bf16.gmra.mrb[0].mxu0 %v325
    %v690 = vpop.f32.mrb[0].mxu0
    %v691 = vadd.f32 %v103, %v690
    %v692 = vpop.f32.mrb[0].mxu0
    %v693 = vpop.f32.mrb[0].mxu0
    %v694 = vadd.f32 %v103, %v693
    %v695 = vpop.f32.mrb[0].mxu0
    %696 = vmatprep.mubr.bf16.mxu0 %v494
    %697 = vmatmul.mubr.bf16.gmra.mrb[0].mxu0 %v327
    %v698 = vpop.f32.mrb[0].mxu0
    %v699 = vadd.f32 %v103, %v698
    %v700 = vpop.f32.mrb[0].mxu0
    %v701 = vpop.f32.mrb[0].mxu0
    %v702 = vadd.f32 %v103, %v701
    %v703 = vpop.f32.mrb[0].mxu0
    %704 = vmatprep.mubr.bf16.mxu0 %v497
    %705 = vmatmul.mubr.bf16.gmra.mrb[0].mxu0 %v329
    %v706 = vpop.f32.mrb[0].mxu0
    %v707 = vadd.f32 %v103, %v706
    %v708 = vpop.f32.mrb[0].mxu0
    %v709 = vpop.f32.mrb[0].mxu0
    %v710 = vadd.f32 %v103, %v709
    %v711 = vpop.f32.mrb[0].mxu0
    %712 = vmatprep.mubr.bf16.mxu0 %v500
    %713 = vmatmul.mubr.bf16.gmra.mrb[0].mxu0 %v331
    %v714 = vpop.f32.mrb[0].mxu0
    %v715 = vadd.f32 %v103, %v714
    %v716 = vpop.f32.mrb[0].mxu0
    %v717 = vpop.f32.mrb[0].mxu0
    %v718 = vadd.f32 %v103, %v717
    %v719 = vpop.f32.mrb[0].mxu0
    %720 = vmatprep.mubr.bf16.mxu0 %v503
    %721 = vmatmul.mubr.bf16.gmra.mrb[0].mxu0 %v333
    %v722 = vpop.f32.mrb[0].mxu0
    %v723 = vadd.f32 %v103, %v722
    %v724 = vpop.f32.mrb[0].mxu0
    %v725 = vpop.f32.mrb[0].mxu0
    %v726 = vadd.f32 %v103, %v725
    %v727 = vpop.f32.mrb[0].mxu0
    %728 = vmatprep.mubr.bf16.mxu0 %v506
    %729 = vmatmul.mubr.bf16.gmra.mrb[0].mxu0 %v335
    %v730 = vpop.f32.mrb[0].mxu0
    %v731 = vadd.f32 %v103, %v730
    %v732 = vpop.f32.mrb[0].mxu0
    %v733 = vpop.f32.mrb[0].mxu0
    %v734 = vadd.f32 %v103, %v733
    %v735 = vpop.f32.mrb[0].mxu0
    %736 = vmatprep.mubr.bf16.mxu0 %v509
    %737 = vmatmul.mubr.bf16.gmra.mrb[0].mxu0 %v337
    %v738 = vpop.f32.mrb[0].mxu0
    %v739 = vadd.f32 %v103, %v738
    %v740 = vpop.f32.mrb[0].mxu0
    %v741 = vpop.f32.mrb[0].mxu0
    %v742 = vadd.f32 %v103, %v741
    %v743 = vpop.f32.mrb[0].mxu0
    %744 = vmatprep.mubr.bf16.mxu0 %v512
    %745 = vmatmul.mubr.bf16.gmra.mrb[0].mxu0 %v339
    %v746 = vpop.f32.mrb[0].mxu0
    %v747 = vadd.f32 %v103, %v746
    %v748 = vpop.f32.mrb[0].mxu0
    %v749 = vpop.f32.mrb[0].mxu0
    %v750 = vadd.f32 %v103, %v749
    %v751 = vpop.f32.mrb[0].mxu0
    %752 = vmatprep.mubr.bf16.mxu0 %v515
    %753 = vmatmul.mubr.bf16.gmra.mrb[0].mxu0 %v341
    %v754 = vpop.f32.mrb[0].mxu0
    %v755 = vadd.f32 %v103, %v754
    %v756 = vpop.f32.mrb[0].mxu0
    %v757 = vpop.f32.mrb[0].mxu0
    %v758 = vadd.f32 %v103, %v757
    %v759 = vpop.f32.mrb[0].mxu0
    %760 = vmatprep.mubr.bf16.mxu0 %v518
    %761 = vmatmul.mubr.bf16.gmra.mrb[0].mxu0 %v343
    %v762 = vpop.f32.mrb[0].mxu0
    %v763 = vadd.f32 %v103, %v762
    %v764 = vpop.f32.mrb[0].mxu0
    %v765 = vpop.f32.mrb[0].mxu0
    %v766 = vadd.f32 %v103, %v765
    %v767 = vpop.f32.mrb[0].mxu0
    %768 = vmatprep.mubr.bf16.mxu0 %v521
    %769 = vmatmul.mubr.bf16.gmra.mrb[0].mxu0 %v345
    %v770 = vpop.f32.mrb[0].mxu0
    %v771 = vadd.f32 %v103, %v770
    %v772 = vpop.f32.mrb[0].mxu0
    %v773 = vpop.f32.mrb[0].mxu0
    %v774 = vadd.f32 %v103, %v773
    %v775 = vpop.f32.mrb[0].mxu0
    %776 = vmatprep.mubr.bf16.mxu0 %v524
    %777 = vmatmul.mubr.bf16.gmra.mrb[0].mxu0 %v347
    %v778 = vpop.f32.mrb[0].mxu0
    %v779 = vadd.f32 %v103, %v778
    %v780 = vpop.f32.mrb[0].mxu0
    %v781 = vpop.f32.mrb[0].mxu0
    %v782 = vadd.f32 %v103, %v781
    %v783 = vpop.f32.mrb[0].mxu0
    %784 = vmatprep.mubr.bf16.mxu0 %v527
    %785 = vmatmul.mubr.bf16.gmra.mrb[0].mxu0 %v349
    %v786 = vpop.f32.mrb[0].mxu0
    %v787 = vadd.f32 %v103, %v786
    %v788 = vpop.f32.mrb[0].mxu0
    %v789 = vpop.f32.mrb[0].mxu0
    %v790 = vadd.f32 %v103, %v789
    %v791 = vpop.f32.mrb[0].mxu0
    %792 = vmatprep.mubr.bf16.mxu0 %v530
    %793 = vmatmul.mubr.bf16.gmra.mrb[0].mxu0 %v351
    %v794 = vpop.f32.mrb[0].mxu0
    %v795 = vadd.f32 %v103, %v794
    %v796 = vpop.f32.mrb[0].mxu0
    %v797 = vpop.f32.mrb[0].mxu0
    %v798 = vadd.f32 %v103, %v797
    %v799 = vpop.f32.mrb[0].mxu0
    %800 = vmatprep.mubr.bf16.mxu0 %v533
    %801 = vmatmul.mubr.bf16.gmra.mrb[0].mxu0 %v353
    %v802 = vpop.f32.mrb[0].mxu0
    %v803 = vadd.f32 %v103, %v802
    %v804 = vpop.f32.mrb[0].mxu0
    %v805 = vpop.f32.mrb[0].mxu0
    %v806 = vadd.f32 %v103, %v805
    %v807 = vpop.f32.mrb[0].mxu0
    %808 = vmatprep.mubr.bf16.mxu0 %v536
    %809 = vmatmul.mubr.bf16.gmra.mrb[0].mxu0 %v355
    %v810 = vpop.f32.mrb[0].mxu0
    %v811 = vadd.f32 %v103, %v810
    %v812 = vpop.f32.mrb[0].mxu0
    %v813 = vpop.f32.mrb[0].mxu0
    %v814 = vadd.f32 %v103, %v813
    %v815 = vpop.f32.mrb[0].mxu0
    %816 = vmatprep.mubr.bf16.mxu0 %v539
    %817 = vmatmul.mubr.bf16.gmra.mrb[0].mxu0 %v357
    %v818 = vpop.f32.mrb[0].mxu0
    %v819 = vadd.f32 %v103, %v818
    %v820 = vpop.f32.mrb[0].mxu0
    %v821 = vpop.f32.mrb[0].mxu0
    %v822 = vadd.f32 %v103, %v821
    %v823 = vpop.f32.mrb[0].mxu0
    %824 = vmatprep.mubr.bf16.mxu0 %v542
    %825 = vmatmul.mubr.bf16.gmra.mrb[0].mxu0 %v359
    %v826 = vpop.f32.mrb[0].mxu0
    %v827 = vadd.f32 %v103, %v826
    %v828 = vpop.f32.mrb[0].mxu0
    %v829 = vpop.f32.mrb[0].mxu0
    %v830 = vadd.f32 %v103, %v829
    %v831 = vpop.f32.mrb[0].mxu0
    %832 = vdwg.mxu0
    %v833 = vmax.f32 %v579, 0.0
    %v834 = vmax.f32 %v582, 0.0
    %v835 = vmax.f32 %v587, 0.0
    %v836 = vmax.f32 %v590, 0.0
    %v837 = vmax.f32 %v595, 0.0
    %v838 = vmax.f32 %v598, 0.0
    %v839 = vmax.f32 %v603, 0.0
    %v840 = vmax.f32 %v606, 0.0
    %v841 = vmax.f32 %v611, 0.0
    %v842 = vmax.f32 %v614, 0.0
    %v843 = vmax.f32 %v619, 0.0
    %v844 = vmax.f32 %v622, 0.0
    %v845 = vmax.f32 %v627, 0.0
    %v846 = vmax.f32 %v630, 0.0
    %v847 = vmax.f32 %v635, 0.0
    %v848 = vmax.f32 %v638, 0.0
    %v849 = vmax.f32 %v643, 0.0
    %v850 = vmax.f32 %v646, 0.0
    %v851 = vmax.f32 %v651, 0.0
    %v852 = vmax.f32 %v654, 0.0
    %v853 = vmax.f32 %v659, 0.0
    %v854 = vmax.f32 %v662, 0.0
    %v855 = vmax.f32 %v667, 0.0
    %v856 = vmax.f32 %v670, 0.0
    %v857 = vmax.f32 %v675, 0.0
    %v858 = vmax.f32 %v678, 0.0
    %v859 = vmax.f32 %v683, 0.0
    %v860 = vmax.f32 %v686, 0.0
    %v861 = vmax.f32 %v691, 0.0
    %v862 = vmax.f32 %v694, 0.0
    %v863 = vmax.f32 %v699, 0.0
    %v864 = vmax.f32 %v702, 0.0
    %v865 = vmax.f32 %v707, 0.0
    %v866 = vmax.f32 %v710, 0.0
    %v867 = vmax.f32 %v715, 0.0
    %v868 = vmax.f32 %v718, 0.0
    %v869 = vmax.f32 %v723, 0.0
    %v870 = vmax.f32 %v726, 0.0
    %v871 = vmax.f32 %v731, 0.0
    %v872 = vmax.f32 %v734, 0.0
    %v873 = vmax.f32 %v739, 0.0
    %v874 = vmax.f32 %v742, 0.0
    %v875 = vmax.f32 %v747, 0.0
    %v876 = vmax.f32 %v750, 0.0
    %v877 = vmax.f32 %v755, 0.0
    %v878 = vmax.f32 %v758, 0.0
    %v879 = vmax.f32 %v763, 0.0
    %v880 = vmax.f32 %v766, 0.0
    %v881 = vmax.f32 %v771, 0.0
    %v882 = vmax.f32 %v774, 0.0
    %v883 = vmax.f32 %v779, 0.0
    %v884 = vmax.f32 %v782, 0.0
    %v885 = vmax.f32 %v787, 0.0
    %v886 = vmax.f32 %v790, 0.0
    %v887 = vmax.f32 %v795, 0.0
    %v888 = vmax.f32 %v798, 0.0
    %v889 = vmax.f32 %v803, 0.0
    %v890 = vmax.f32 %v806, 0.0
    %v891 = vmax.f32 %v811, 0.0
    %v892 = vmax.f32 %v814, 0.0
    %v893 = vmax.f32 %v819, 0.0
    %v894 = vmax.f32 %v822, 0.0
    %v895 = vmax.f32 %v827, 0.0
    %v896 = vmax.f32 %v830, 0.0
    %v897 = vpack.c.bf16 %v834, %v833
    %v898 = vpack.c.bf16 %v836, %v835
    %v899 = vpack.c.bf16 %v838, %v837
    %v900 = vpack.c.bf16 %v840, %v839
    %v901 = vpack.c.bf16 %v842, %v841
    %v902 = vpack.c.bf16 %v844, %v843
    %v903 = vpack.c.bf16 %v846, %v845
    %v904 = vpack.c.bf16 %v848, %v847
    %v905 = vpack.c.bf16 %v850, %v849
    %v906 = vpack.c.bf16 %v852, %v851
    %v907 = vpack.c.bf16 %v854, %v853
    %v908 = vpack.c.bf16 %v856, %v855
    %v909 = vpack.c.bf16 %v858, %v857
    %v910 = vpack.c.bf16 %v860, %v859
    %v911 = vpack.c.bf16 %v862, %v861
    %v912 = vpack.c.bf16 %v864, %v863
    %v913 = vpack.c.bf16 %v866, %v865
    %v914 = vpack.c.bf16 %v868, %v867
    %v915 = vpack.c.bf16 %v870, %v869
    %v916 = vpack.c.bf16 %v872, %v871
    %v917 = vpack.c.bf16 %v874, %v873
    %v918 = vpack.c.bf16 %v876, %v875
    %v919 = vpack.c.bf16 %v878, %v877
    %v920 = vpack.c.bf16 %v880, %v879
    %v921 = vpack.c.bf16 %v882, %v881
    %v922 = vpack.c.bf16 %v884, %v883
    %v923 = vpack.c.bf16 %v886, %v885
    %v924 = vpack.c.bf16 %v888, %v887
    %v925 = vpack.c.bf16 %v890, %v889
    %v926 = vpack.c.bf16 %v892, %v891
    %v927 = vpack.c.bf16 %v894, %v893
    %v928 = vpack.c.bf16 %v896, %v895
    %v961 = vunpack.c.l.b16 %v897
    %v962 = vunpack.c.h.b16 %v897
    %v963 = vunpack.c.l.b16 %v898
    %v964 = vunpack.c.h.b16 %v898
    %v965 = vunpack.c.l.b16 %v899
    %v966 = vunpack.c.h.b16 %v899
    %v967 = vunpack.c.l.b16 %v900
    %v968 = vunpack.c.h.b16 %v900
    %v969 = vunpack.c.l.b16 %v901
    %v970 = vunpack.c.h.b16 %v901
    %v971 = vunpack.c.l.b16 %v902
    %v972 = vunpack.c.h.b16 %v902
    %v973 = vunpack.c.l.b16 %v903
    %v974 = vunpack.c.h.b16 %v903
    %v975 = vunpack.c.l.b16 %v904
    %v976 = vunpack.c.h.b16 %v904
    %v977 = vunpack.c.l.b16 %v905
    %v978 = vunpack.c.h.b16 %v905
    %v979 = vunpack.c.l.b16 %v906
    %v980 = vunpack.c.h.b16 %v906
    %v981 = vunpack.c.l.b16 %v907
    %v982 = vunpack.c.h.b16 %v907
    %v983 = vunpack.c.l.b16 %v908
    %v984 = vunpack.c.h.b16 %v908
    %v985 = vunpack.c.l.b16 %v909
    %v986 = vunpack.c.h.b16 %v909
    %v987 = vunpack.c.l.b16 %v910
    %v988 = vunpack.c.h.b16 %v910
    %v989 = vunpack.c.l.b16 %v911
    %v990 = vunpack.c.h.b16 %v911
    %v991 = vunpack.c.l.b16 %v912
    %v992 = vunpack.c.h.b16 %v912
    %v993 = vunpack.c.l.b16 %v913
    %v994 = vunpack.c.h.b16 %v913
    %v995 = vunpack.c.l.b16 %v914
    %v996 = vunpack.c.h.b16 %v914
    %v997 = vunpack.c.l.b16 %v915
    %v998 = vunpack.c.h.b16 %v915
    %v999 = vunpack.c.l.b16 %v916
    %v1000 = vunpack.c.h.b16 %v916
    %v1001 = vunpack.c.l.b16 %v917
    %v1002 = vunpack.c.h.b16 %v917
    %v1003 = vunpack.c.l.b16 %v918
    %v1004 = vunpack.c.h.b16 %v918
    %v1005 = vunpack.c.l.b16 %v919
    %v1006 = vunpack.c.h.b16 %v919
    %v1007 = vunpack.c.l.b16 %v920
    %v1008 = vunpack.c.h.b16 %v920
    %v1009 = vunpack.c.l.b16 %v921
    %v1010 = vunpack.c.h.b16 %v921
    %v1011 = vunpack.c.l.b16 %v922
    %v1012 = vunpack.c.h.b16 %v922
    %v1013 = vunpack.c.l.b16 %v923
    %v1014 = vunpack.c.h.b16 %v923
    %v1015 = vunpack.c.l.b16 %v924
    %v1016 = vunpack.c.h.b16 %v924
    %v1017 = vunpack.c.l.b16 %v925
    %v1018 = vunpack.c.h.b16 %v925
    %v1019 = vunpack.c.l.b16 %v926
    %v1020 = vunpack.c.h.b16 %v926
    %v1021 = vunpack.c.l.b16 %v927
    %v1022 = vunpack.c.h.b16 %v927
    %v1023 = vunpack.c.l.b16 %v928
    %v1024 = vunpack.c.h.b16 %v928
    %v1025 = vpack.c.b16 %v961, %v961
    %v1026 = vpack.c.b16 %v962, %v962
    %v1027 = vpack.c.b16 %v963, %v963
    %v1028 = vpack.c.b16 %v964, %v964
    %v1029 = vpack.c.b16 %v965, %v965
    %v1030 = vpack.c.b16 %v966, %v966
    %v1031 = vpack.c.b16 %v967, %v967
    %v1032 = vpack.c.b16 %v968, %v968
    %v1033 = vpack.c.b16 %v969, %v969
    %v1034 = vpack.c.b16 %v970, %v970
    %v1035 = vpack.c.b16 %v971, %v971
    %v1036 = vpack.c.b16 %v972, %v972
    %v1037 = vpack.c.b16 %v973, %v973
    %v1038 = vpack.c.b16 %v974, %v974
    %v1039 = vpack.c.b16 %v975, %v975
    %v1040 = vpack.c.b16 %v976, %v976
    %v1041 = vpack.c.b16 %v977, %v977
    %v1042 = vpack.c.b16 %v978, %v978
    %v1043 = vpack.c.b16 %v979, %v979
    %v1044 = vpack.c.b16 %v980, %v980
    %v1045 = vpack.c.b16 %v981, %v981
    %v1046 = vpack.c.b16 %v982, %v982
    %v1047 = vpack.c.b16 %v983, %v983
    %v1048 = vpack.c.b16 %v984, %v984
    %v1049 = vpack.c.b16 %v985, %v985
    %v1050 = vpack.c.b16 %v986, %v986
    %v1051 = vpack.c.b16 %v987, %v987
    %v1052 = vpack.c.b16 %v988, %v988
    %v1053 = vpack.c.b16 %v989, %v989
    %v1054 = vpack.c.b16 %v990, %v990
    %v1055 = vpack.c.b16 %v991, %v991
    %v1056 = vpack.c.b16 %v992, %v992
    %v1057 = vpack.c.b16 %v993, %v993
    %v1058 = vpack.c.b16 %v994, %v994
    %v1059 = vpack.c.b16 %v995, %v995
    %v1060 = vpack.c.b16 %v996, %v996
    %v1061 = vpack.c.b16 %v997, %v997
    %v1062 = vpack.c.b16 %v998, %v998
    %v1063 = vpack.c.b16 %v999, %v999
    %v1064 = vpack.c.b16 %v1000, %v1000
    %v1065 = vpack.c.b16 %v1001, %v1001
    %v1066 = vpack.c.b16 %v1002, %v1002
    %v1067 = vpack.c.b16 %v1003, %v1003
    %v1068 = vpack.c.b16 %v1004, %v1004
    %v1069 = vpack.c.b16 %v1005, %v1005
    %v1070 = vpack.c.b16 %v1006, %v1006
    %v1071 = vpack.c.b16 %v1007, %v1007
    %v1072 = vpack.c.b16 %v1008, %v1008
    %v1073 = vpack.c.b16 %v1009, %v1009
    %v1074 = vpack.c.b16 %v1010, %v1010
    %v1075 = vpack.c.b16 %v1011, %v1011
    %v1076 = vpack.c.b16 %v1012, %v1012
    %v1077 = vpack.c.b16 %v1013, %v1013
    %v1078 = vpack.c.b16 %v1014, %v1014
    %v1079 = vpack.c.b16 %v1015, %v1015
    %v1080 = vpack.c.b16 %v1016, %v1016
    %v1081 = vpack.c.b16 %v1017, %v1017
    %v1082 = vpack.c.b16 %v1018, %v1018
    %v1083 = vpack.c.b16 %v1019, %v1019
    %v1084 = vpack.c.b16 %v1020, %v1020
    %v1085 = vpack.c.b16 %v1021, %v1021
    %v1086 = vpack.c.b16 %v1022, %v1022
    %v1087 = vpack.c.b16 %v1023, %v1023
    %v1088 = vpack.c.b16 %v1024, %v1024
    %1153 = vst [vmem:[#allocation2] sm:$0xf] %v1025
    %1154 = vst [vmem:[#allocation2 + $0x4] sm:$0xf] %v1026
    %1155 = vst [vmem:[#allocation2 + $0x8] sm:$0xf] %v1027
    %1156 = vst [vmem:[#allocation2 + $0xc] sm:$0xf] %v1028
    %1157 = vst [vmem:[#allocation2 + $0x10] sm:$0xf] %v1029
    %1158 = vst [vmem:[#allocation2 + $0x14] sm:$0xf] %v1030
    %1159 = vst [vmem:[#allocation2 + $0x18] sm:$0xf] %v1031
    %1160 = vst [vmem:[#allocation2 + $0x1c] sm:$0xf] %v1032
    %1161 = vst [vmem:[#allocation2 + $0x20] sm:$0xf] %v1033
    %1162 = vst [vmem:[#allocation2 + $0x24] sm:$0xf] %v1034
    %1163 = vst [vmem:[#allocation2 + $0x28] sm:$0xf] %v1035
    %1164 = vst [vmem:[#allocation2 + $0x2c] sm:$0xf] %v1036
    %1165 = vst [vmem:[#allocation2 + $0x30] sm:$0xf] %v1037
    %1166 = vst [vmem:[#allocation2 + $0x34] sm:$0xf] %v1038
    %1167 = vst [vmem:[#allocation2 + $0x38] sm:$0xf] %v1039
    %1168 = vst [vmem:[#allocation2 + $0x3c] sm:$0xf] %v1040
    %1169 = vst [vmem:[#allocation2 + $0x40] sm:$0xf] %v1041
    %1170 = vst [vmem:[#allocation2 + $0x44] sm:$0xf] %v1042
    %1171 = vst [vmem:[#allocation2 + $0x48] sm:$0xf] %v1043
    %1172 = vst [vmem:[#allocation2 + $0x4c] sm:$0xf] %v1044
    %1173 = vst [vmem:[#allocation2 + $0x50] sm:$0xf] %v1045
    %1174 = vst [vmem:[#allocation2 + $0x54] sm:$0xf] %v1046
    %1175 = vst [vmem:[#allocation2 + $0x58] sm:$0xf] %v1047
    %1176 = vst [vmem:[#allocation2 + $0x5c] sm:$0xf] %v1048
    %1177 = vst [vmem:[#allocation2 + $0x60] sm:$0xf] %v1049
    %1178 = vst [vmem:[#allocation2 + $0x64] sm:$0xf] %v1050
    %1179 = vst [vmem:[#allocation2 + $0x68] sm:$0xf] %v1051
    %1180 = vst [vmem:[#allocation2 + $0x6c] sm:$0xf] %v1052
    %1181 = vst [vmem:[#allocation2 + $0x70] sm:$0xf] %v1053
    %1182 = vst [vmem:[#allocation2 + $0x74] sm:$0xf] %v1054
    %1183 = vst [vmem:[#allocation2 + $0x78] sm:$0xf] %v1055
    %1184 = vst [vmem:[#allocation2 + $0x7c] sm:$0xf] %v1056
    %1185 = vst [vmem:[#allocation2 + $0x80] sm:$0xf] %v1057
    %1186 = vst [vmem:[#allocation2 + $0x84] sm:$0xf] %v1058
    %1187 = vst [vmem:[#allocation2 + $0x88] sm:$0xf] %v1059
    %1188 = vst [vmem:[#allocation2 + $0x8c] sm:$0xf] %v1060
    %1189 = vst [vmem:[#allocation2 + $0x90] sm:$0xf] %v1061
    %1190 = vst [vmem:[#allocation2 + $0x94] sm:$0xf] %v1062
    %1191 = vst [vmem:[#allocation2 + $0x98] sm:$0xf] %v1063
    %1192 = vst [vmem:[#allocation2 + $0x9c] sm:$0xf] %v1064
    %1193 = vst [vmem:[#allocation2 + $0xa0] sm:$0xf] %v1065
    %1194 = vst [vmem:[#allocation2 + $0xa4] sm:$0xf] %v1066
    %1195 = vst [vmem:[#allocation2 + $0xa8] sm:$0xf] %v1067
    %1196 = vst [vmem:[#allocation2 + $0xac] sm:$0xf] %v1068
    %1197 = vst [vmem:[#allocation2 + $0xb0] sm:$0xf] %v1069
    %1198 = vst [vmem:[#allocation2 + $0xb4] sm:$0xf] %v1070
    %1199 = vst [vmem:[#allocation2 + $0xb8] sm:$0xf] %v1071
    %1200 = vst [vmem:[#allocation2 + $0xbc] sm:$0xf] %v1072
    %1201 = vst [vmem:[#allocation2 + $0xc0] sm:$0xf] %v1073
    %1202 = vst [vmem:[#allocation2 + $0xc4] sm:$0xf] %v1074
    %1203 = vst [vmem:[#allocation2 + $0xc8] sm:$0xf] %v1075
    %1204 = vst [vmem:[#allocation2 + $0xcc] sm:$0xf] %v1076
    %1205 = vst [vmem:[#allocation2 + $0xd0] sm:$0xf] %v1077
    %1206 = vst [vmem:[#allocation2 + $0xd4] sm:$0xf] %v1078
    %1207 = vst [vmem:[#allocation2 + $0xd8] sm:$0xf] %v1079
    %1208 = vst [vmem:[#allocation2 + $0xdc] sm:$0xf] %v1080
    %1209 = vst [vmem:[#allocation2 + $0xe0] sm:$0xf] %v1081
    %1210 = vst [vmem:[#allocation2 + $0xe4] sm:$0xf] %v1082
    %1211 = vst [vmem:[#allocation2 + $0xe8] sm:$0xf] %v1083
    %1212 = vst [vmem:[#allocation2 + $0xec] sm:$0xf] %v1084
    %1213 = vst [vmem:[#allocation2 + $0xf0] sm:$0xf] %v1085
    %1214 = vst [vmem:[#allocation2 + $0xf4] sm:$0xf] %v1086
    %1215 = vst [vmem:[#allocation2 + $0xf8] sm:$0xf] %v1087
    %1216 = vst [vmem:[#allocation2 + $0xfc] sm:$0xf] %v1088
    // Predicated region
    $region14: #{basic_conv2d_forward.1} parent=1 // pred_check
      _
    $region15: #{basic_conv2d_forward.1} parent=1 // pred_check_branch
      %1218 = sbr.rel (0) target = $region17
    $region16: #{basic_conv2d_forward.1} parent=1 // pred_region
      %s1220 = ssub.s32 4096, 4096
      %1221 = vsyncadd [#allocation3], %s1220
      %s1222 = sshll.u32 [#allocation2], 4
      %s1223 = int_to_ptr.vmem [resolvable:$true] %s1222
      %1228 = dma.vmem_to_hbm [thread:$0]  %s1223, 4096, %s3, [#allocation3], 64, 64, 4
    $region17: #{basic_conv2d_forward.1} parent=1 // pred_fallthru
      _
    // Predicated region
    $region18: #{basic_conv2d_forward.1} parent=1 // pred_check
      _
    $region19: #{basic_conv2d_forward.1} parent=1 // pred_check_branch
      %1230 = sbr.rel (0) target = $region21
    $region20: #{basic_conv2d_forward.1} parent=1 // pred_region
      %1231 = dma.done [#allocation3], 4096
    $region21: #{basic_conv2d_forward.1} parent=1 // pred_fallthru
      _
    %1232 = vsyncpa [#allocation3], 1

</llo_original>
